<compile_context>
chip_gen: v7x
topology: tpu7x:2x2x1
jax: 0.10.0
libtpu: 0.0.40
codegen_flags: <defaults>
</compile_context>

<pallas_src>
import functools
import math

import jax
import jax.numpy as jnp
from jax import lax
from jax.experimental import pallas as pl
from jax.experimental.pallas import tpu as pltpu


def _round_up(x, m):
    return ((x + m - 1) // m) * m


# ------------------------------ Pallas kernel -------------------------------

def _cls_kernel(x_ref, w1_ref, b1_ref, w2_ref, b2_ref,
                bot_ref, logit_ref, prob_ref, *, out_dim):
    # bottleneck: (TM, Kp)bf16 @ (Kp, B)bf16 -> f32 acc, + bias (f32 epilogue)
    h = jnp.dot(x_ref[...], w1_ref[...], preferred_element_type=jnp.float32)
    h = h + b1_ref[...]
    bot_ref[...] = h

    # fc: (TM, B)bf16 @ (B, Np)bf16 -> f32 acc, + bias
    logits = jnp.dot(h.astype(jnp.bfloat16), w2_ref[...],
                     preferred_element_type=jnp.float32)
    logits = logits + b2_ref[...]
    logit_ref[...] = logits

    # softmax over the real columns only (padded lanes masked to -inf-ish)
    col = lax.broadcasted_iota(jnp.int32, logits.shape, 1)
    masked = jnp.where(col < out_dim, logits, jnp.float32(-1e30))
    m = jnp.max(masked, axis=-1, keepdims=True)
    e = jnp.exp(masked - m)
    inv = pl.reciprocal(jnp.sum(e, axis=-1, keepdims=True), approx=True)
    prob_ref[...] = e * inv


# ------------------------------ Pallas wrapper -------------------------------

def cls_forward(params, x, *, tm_cap=512):
    """Fused CLS forward.  x: (M, in_dim) f32.  Returns [x, bottleneck, fc, softmax]."""
    w1, b1 = params["bottleneck"]      # (B, in_dim), (B,)   -- PyTorch Linear layout
    w2, b2 = params["fc"]              # (out_dim, B), (out_dim,)
    M, K = x.shape
    Bn = w1.shape[0]
    out_dim = w2.shape[0]

    Kp = _round_up(K, 128)             # aligned K loads
    Np = _round_up(out_dim, 128)       # lane-dense fc / softmax output
    Mp = _round_up(M, 8)
    TM = Mp if Mp <= tm_cap else tm_cap
    Mp = _round_up(Mp, TM)
    # TODO(synk): with M <= 8 the grid has a single step, so megacore can't split
    # the M axis; harmless at this size.

    xp = x
    if Mp != M or Kp != K:
        xp = jnp.pad(x, ((0, Mp - M), (0, Kp - K)))
    xp = xp.astype(jnp.bfloat16)

    # weights stored (in, out) so the output channel is the lane dim; zero-pad K/N
    w1t = jnp.pad(w1.T, ((0, Kp - K), (0, 0))).astype(jnp.bfloat16)           # (Kp, B)
    w2t = jnp.pad(w2.T, ((0, 0), (0, Np - out_dim))).astype(jnp.bfloat16)     # (B, Np)
    b1r = b1.reshape(1, Bn).astype(jnp.float32)
    b2r = jnp.pad(b2, (0, Np - out_dim)).reshape(1, Np).astype(jnp.float32)

    kernel = functools.partial(_cls_kernel, out_dim=out_dim)

    bot, logits, probs = pl.pallas_call(
        kernel,
        out_shape=(
            jax.ShapeDtypeStruct((Mp, Bn), jnp.float32),
            jax.ShapeDtypeStruct((Mp, Np), jnp.float32),
            jax.ShapeDtypeStruct((Mp, Np), jnp.float32),
        ),
        grid=(Mp // TM,),
        in_specs=[
            pl.BlockSpec((TM, Kp), lambda i: (i, 0)),   # x tile (walks with grid)
            pl.BlockSpec((Kp, Bn), lambda i: (0, 0)),   # bottleneck weight (resident)
            pl.BlockSpec((1, Bn), lambda i: (0, 0)),    # bottleneck bias (resident)
            pl.BlockSpec((Bn, Np), lambda i: (0, 0)),   # fc weight (resident)
            pl.BlockSpec((1, Np), lambda i: (0, 0)),    # fc bias (resident)
        ],
        out_specs=(
            pl.BlockSpec((TM, Bn), lambda i: (i, 0)),
            pl.BlockSpec((TM, Np), lambda i: (i, 0)),
            pl.BlockSpec((TM, Np), lambda i: (i, 0)),
        ),
        compiler_params=pltpu.CompilerParams(
            dimension_semantics=("parallel",),
        ),
    )(xp, w1t, b1r, w2t, b2r)

    return [x, bot[:M], logits[:M, :out_dim], probs[:M, :out_dim]]


# --------------------------- parameter initialization ------------------------

def _linear_init(key, out_dim, in_dim):
    # PyTorch nn.Linear default init: U(-1/sqrt(in), 1/sqrt(in)) for weight and bias.
    kw, kb = jax.random.split(key)
    bound = 1.0 / math.sqrt(in_dim)
    w = jax.random.uniform(kw, (out_dim, in_dim), jnp.float32, -bound, bound)
    b = jax.random.uniform(kb, (out_dim,), jnp.float32, -bound, bound)
    return w, b


def init_cls_params(key, in_dim, out_dim, bottleneck_dim=256):
    k1, k2 = jax.random.split(key)
    return {
        "bottleneck": _linear_init(k1, bottleneck_dim, in_dim),
        "fc": _linear_init(k2, out_dim, bottleneck_dim),
    }


# ------------------------------ pure-JAX reference ---------------------------

def _cls_reference(params, x):
    w1, b1 = params["bottleneck"]
    w2, b2 = params["fc"]
    h = x @ w1.T + b1
    l = h @ w2.T + b2
    p = jax.nn.softmax(l, axis=-1)
    return [x, h, l, p]


# ----------------------------------- main ------------------------------------

if __name__ == "__main__":
    in_dim, out_dim, batch = 512, 12, 2
    key = jax.random.PRNGKey(0)
    kp, kx = jax.random.split(key)
    params = init_cls_params(kp, in_dim, out_dim)
    x = jax.random.normal(kx, (batch, in_dim), jnp.float32)

    out = cls_forward(params, x)
    jax.block_until_ready(out)
    x0, bot, logits, probs = out

    assert x0.shape == (batch, in_dim)
    assert bot.shape == (batch, 256)
    assert logits.shape == (batch, out_dim)
    assert probs.shape == (batch, out_dim)
    assert bool(jnp.all(jnp.isfinite(probs)))
    assert bool(jnp.all(jnp.abs(jnp.sum(probs, axis=-1) - 1.0) < 1e-2))

    # loose tolerance: kernel uses bf16 MXU operands with f32 accumulation and
    # an approximate (EUP) reciprocal in the softmax.
    _, rbot, rlog, rprob = _cls_reference(params, x)
    assert bool(jnp.max(jnp.abs(bot - rbot)) < 3e-2)
    assert bool(jnp.max(jnp.abs(probs - rprob)) < 3e-2)

    print("KERNEL_OK")
</pallas_src>

<mosaic_0001>
module attributes {stable_mosaic.version = 11 : i64} {
  func.func @_cls_kernel(%arg0: i32, %arg1: memref<8x512xbf16, #tpu.memory_space<vmem>>, %arg2: memref<512x256xbf16, #tpu.memory_space<vmem>>, %arg3: memref<1x256xf32, #tpu.memory_space<vmem>>, %arg4: memref<256x128xbf16, #tpu.memory_space<vmem>>, %arg5: memref<1x128xf32, #tpu.memory_space<vmem>>, %arg6: memref<8x256xf32, #tpu.memory_space<vmem>>, %arg7: memref<8x128xf32, #tpu.memory_space<vmem>>, %arg8: memref<8x128xf32, #tpu.memory_space<vmem>>) attributes {dimension_semantics = [#tpu.dimension_semantics<parallel>], iteration_bounds = array<i64: 1>, scalar_prefetch = 0 : i64, scratch_operands = 0 : i64, tpu.core_type = #tpu.core_type<tc>, window_params = [{transform_indices = @transform_0, window_bounds = array<i64: 8, 512>}, {pipeline_mode = #tpu.pipeline_mode<synchronous>, transform_indices = @transform_1, window_bounds = array<i64: 512, 256>}, {pipeline_mode = #tpu.pipeline_mode<synchronous>, transform_indices = @transform_2, window_bounds = array<i64: 1, 256>}, {pipeline_mode = #tpu.pipeline_mode<synchronous>, transform_indices = @transform_3, window_bounds = array<i64: 256, 128>}, {pipeline_mode = #tpu.pipeline_mode<synchronous>, transform_indices = @transform_4, window_bounds = array<i64: 1, 128>}, {transform_indices = @transform_5, window_bounds = array<i64: 8, 256>}, {transform_indices = @transform_6, window_bounds = array<i64: 8, 128>}, {transform_indices = @transform_7, window_bounds = array<i64: 8, 128>}]} {
    %c0 = arith.constant 0 : index
    %c0_0 = arith.constant 0 : index
    %0 = vector.load %arg1[%c0, %c0_0] : memref<8x512xbf16, #tpu.memory_space<vmem>>, vector<8x512xbf16>
    %c0_1 = arith.constant 0 : index
    %c0_2 = arith.constant 0 : index
    %1 = vector.load %arg2[%c0_1, %c0_2] : memref<512x256xbf16, #tpu.memory_space<vmem>>, vector<512x256xbf16>
    %cst = arith.constant dense<0.000000e+00> : vector<8x256xf32>
    %2 = tpu.matmul %0, %1, %cst {dimension_numbers = #tpu.dot_dimension_numbers<[1], [0], [0], [1], [0, 0, 1, 1], [], []>} : vector<8x512xbf16>, vector<512x256xbf16>, vector<8x256xf32> -> vector<8x256xf32>
    %c0_3 = arith.constant 0 : index
    %c0_4 = arith.constant 0 : index
    %3 = vector.load %arg3[%c0_3, %c0_4] : memref<1x256xf32, #tpu.memory_space<vmem>>, vector<1x256xf32>
    %4 = vector.broadcast %3 : vector<1x256xf32> to vector<8x256xf32>
    %5 = arith.addf %2, %4 : vector<8x256xf32>
    %c0_5 = arith.constant 0 : index
    %c0_6 = arith.constant 0 : index
    %6 = vector.load %arg6[%c0_5, %c0_6] : memref<8x256xf32, #tpu.memory_space<vmem>>, vector<8x256xf32>
    tpu.vector_store %arg6[%c0_5, %c0_6], %5 {strides = array<i32>} : memref<8x256xf32, #tpu.memory_space<vmem>>, vector<8x256xf32>,
    %7 = arith.truncf %5 : vector<8x256xf32> to vector<8x256xbf16>
    %c0_7 = arith.constant 0 : index
    %c0_8 = arith.constant 0 : index
    %8 = vector.load %arg4[%c0_7, %c0_8] : memref<256x128xbf16, #tpu.memory_space<vmem>>, vector<256x128xbf16>
    %cst_9 = arith.constant dense<0.000000e+00> : vector<8x128xf32>
    %9 = tpu.matmul %7, %8, %cst_9 {dimension_numbers = #tpu.dot_dimension_numbers<[1], [0], [0], [1], [0, 0, 1, 1], [], []>} : vector<8x256xbf16>, vector<256x128xbf16>, vector<8x128xf32> -> vector<8x128xf32>
    %c0_10 = arith.constant 0 : index
    %c0_11 = arith.constant 0 : index
    %10 = vector.load %arg5[%c0_10, %c0_11] : memref<1x128xf32, #tpu.memory_space<vmem>>, vector<1x128xf32>
    %11 = vector.broadcast %10 : vector<1x128xf32> to vector<8x128xf32>
    %12 = arith.addf %9, %11 : vector<8x128xf32>
    %c0_12 = arith.constant 0 : index
    %c0_13 = arith.constant 0 : index
    %13 = vector.load %arg7[%c0_12, %c0_13] : memref<8x128xf32, #tpu.memory_space<vmem>>, vector<8x128xf32>
    tpu.vector_store %arg7[%c0_12, %c0_13], %12 {strides = array<i32>} : memref<8x128xf32, #tpu.memory_space<vmem>>, vector<8x128xf32>,
    %14 = tpu.iota {dimensions = array<i32: 1>} : vector<8x128xi32>
    %c12_i32 = arith.constant 12 : i32
    %15 = vector.broadcast %c12_i32 : i32 to vector<8x128xi32>
    %16 = arith.cmpi slt, %14, %15 : vector<8x128xi32>
    %cst_14 = arith.constant -1.000000e+30 : f32
    %17 = vector.broadcast %cst_14 : f32 to vector<8x128xf32>
    %18 = arith.select %16, %12, %17 : vector<8x128xi1>, vector<8x128xf32>
    %cst_15 = arith.constant dense<0xFF800000> : vector<8xf32>
    %19 = vector.multi_reduction <maximumf>, %18, %cst_15 [1] : vector<8x128xf32> to vector<8xf32>
    %20 = vector.shape_cast %19 : vector<8xf32> to vector<8x1xf32>
    %21 = vector.broadcast %20 : vector<8x1xf32> to vector<8x128xf32>
    %22 = arith.subf %18, %21 : vector<8x128xf32>
    %23 = math.exp %22 : vector<8x128xf32>
    %cst_16 = arith.constant dense<0.000000e+00> : vector<8xf32>
    %24 = vector.multi_reduction <add>, %23, %cst_16 [1] : vector<8x128xf32> to vector<8xf32>
    %25 = vector.shape_cast %24 : vector<8xf32> to vector<8x1xf32>
    %26 = tpu.reciprocal %25 {approx = true} : vector<8x1xf32> -> vector<8x1xf32>
    %27 = vector.broadcast %26 : vector<8x1xf32> to vector<8x128xf32>
    %28 = arith.mulf %23, %27 : vector<8x128xf32>
    %c0_17 = arith.constant 0 : index
    %c0_18 = arith.constant 0 : index
    %29 = vector.load %arg8[%c0_17, %c0_18] : memref<8x128xf32, #tpu.memory_space<vmem>>, vector<8x128xf32>
    tpu.vector_store %arg8[%c0_17, %c0_18], %28 {strides = array<i32>} : memref<8x128xf32, #tpu.memory_space<vmem>>, vector<8x128xf32>,
    return
  }
  func.func @transform_0(%arg0: i32) -> (i32, i32) {
    %c0_i32 = arith.constant 0 : i32
    %c0_i32_0 = arith.constant 0 : i32
    return %arg0, %c0_i32 : i32, i32
  }
  func.func @transform_1(%arg0: i32) -> (i32, i32) {
    %c0_i32 = arith.constant 0 : i32
    %c0_i32_0 = arith.constant 0 : i32
    %c0_i32_1 = arith.constant 0 : i32
    return %c0_i32, %c0_i32_0 : i32, i32
  }
  func.func @transform_2(%arg0: i32) -> (i32, i32) {
    %c0_i32 = arith.constant 0 : i32
    %c0_i32_0 = arith.constant 0 : i32
    %c0_i32_1 = arith.constant 0 : i32
    return %c0_i32, %c0_i32_0 : i32, i32
  }
  func.func @transform_3(%arg0: i32) -> (i32, i32) {
    %c0_i32 = arith.constant 0 : i32
    %c0_i32_0 = arith.constant 0 : i32
    %c0_i32_1 = arith.constant 0 : i32
    return %c0_i32, %c0_i32_0 : i32, i32
  }
  func.func @transform_4(%arg0: i32) -> (i32, i32) {
    %c0_i32 = arith.constant 0 : i32
    %c0_i32_0 = arith.constant 0 : i32
    %c0_i32_1 = arith.constant 0 : i32
    return %c0_i32, %c0_i32_0 : i32, i32
  }
  func.func @transform_5(%arg0: i32) -> (i32, i32) {
    %c0_i32 = arith.constant 0 : i32
    %c0_i32_0 = arith.constant 0 : i32
    return %arg0, %c0_i32 : i32, i32
  }
  func.func @transform_6(%arg0: i32) -> (i32, i32) {
    %c0_i32 = arith.constant 0 : i32
    %c0_i32_0 = arith.constant 0 : i32
    return %arg0, %c0_i32 : i32, i32
  }
  func.func @transform_7(%arg0: i32) -> (i32, i32) {
    %c0_i32 = arith.constant 0 : i32
    %c0_i32_0 = arith.constant 0 : i32
    return %arg0, %c0_i32 : i32, i32
  }
}

</mosaic_0001>

<llo_original>
// kernel: tpu_custom_call.1
$region0: #{tpu_custom_call.1}
  #allocation0 [shape = 'u32[]', space=smem, size = 0x4, offset = 0x4, fixed_abs, tag = 'smem constant byte address 0x4 - core index']
  #allocation1 [shape = 'u32[144,128]{1,0:T(1,128)}', space=vmem, size = 0x12000, scoped, tag = 'internal scratch']
  %s0 = inlined_call_operand.hbm [shape: bf16[8,512], index: 0, kind: input, shape index: {}]
  %s1 = inlined_call_operand.hbm [shape: bf16[512,256], index: 1, kind: input, shape index: {}]
  %s2 = inlined_call_operand.vmem [shape: f32[1,256], index: 2, kind: input, shape index: {}]
  %s3 = inlined_call_operand.hbm [shape: bf16[256,128], index: 3, kind: input, shape index: {}]
  %s4 = inlined_call_operand.vmem [shape: f32[1,128], index: 4, kind: input, shape index: {}]
  %s5 = inlined_call_operand.hbm [shape: f32[8,256], index: 5, kind: output, shape index: {0}]
  %s6 = inlined_call_operand.hbm [shape: f32[8,128], index: 6, kind: output, shape index: {1}]
  %s7 = inlined_call_operand.hbm [shape: f32[8,128], index: 7, kind: output, shape index: {2}]
  %8 = xla_tuple %s5, %s6, %s7
  %s9 = sld [smem:[#allocation0]]
  $region58: #{tpu_custom_call.1} parent=0
    _
  %s11 = ssub.s32 1, %s9
  %s12 = scalar_select 0, %s11, %s9
  $region1: #{tpu_custom_call.1} parent=0
    #allocation2 [shape = 'u8[8192]{0}', space=vmem, size = 0x2000, scoped, tag = 'input window, operand 0, single buffered']
    #allocation3 [shape = 's32[1]{0}', space=sflag, size = 0x4, scoped, tag = 'scoped memory for tpu_custom_call.1']
    #allocation4 [shape = 's32[1]{0}', space=sflag, size = 0x4, scoped, tag = 'scoped memory for tpu_custom_call.1']
    #allocation5 [shape = 'u8[262144]{0}', space=vmem, size = 0x40000, scoped, tag = 'input window, operand 1, single buffered']
    #allocation6 [shape = 's32[1]{0}', space=sflag, size = 0x4, scoped, tag = 'scoped memory for tpu_custom_call.1']
    #allocation7 [shape = 'u8[65536]{0}', space=vmem, size = 0x10000, scoped, tag = 'input window, operand 3, single buffered']
    #allocation8 [shape = 'u8[8192]{0}', space=vmem, size = 0x2000, scoped, tag = 'output window, operand 0, single buffered']
    #allocation9 [shape = 'u8[4096]{0}', space=vmem, size = 0x1000, scoped, tag = 'output window, operand 1, single buffered']
    #allocation10 [shape = 's32[1]{0}', space=sflag, size = 0x4, scoped, tag = 'scoped memory for tpu_custom_call.1']
    #allocation11 [shape = 'u8[4096]{0}', space=vmem, size = 0x1000, scoped, tag = 'output window, operand 2, single buffered']
    %13 = vsyncpa [#allocation3], 0
    %14 = vsyncpa [#allocation6], 0
    %15 = vsyncpa [#allocation4], 0
    %16 = vsyncpa [#allocation10], 0
    // Predicated region
    $region2: #{tpu_custom_call.1} parent=1 // pred_check
      _
    $region3: #{tpu_custom_call.1} parent=1 // pred_check_branch
      %18 = sbr.rel (0) target = $region5
    $region4: #{tpu_custom_call.1} parent=1 // pred_region
      %s20 = ssub.s32 256, 256
      %21 = vsyncadd [#allocation3], %s20
      %s23 = sshll.u32 [#allocation2], 4
      %s24 = int_to_ptr.vmem [resolvable:$true] %s23
      %26 = dma.hbm_to_vmem [thread:$0]  %s0, 256, %s24, [#allocation3]
    $region5: #{tpu_custom_call.1} parent=1 // pred_fallthru
      _
    // Predicated region
    $region6: #{tpu_custom_call.1} parent=1 // pred_check
      _
    $region7: #{tpu_custom_call.1} parent=1 // pred_check_branch
      %28 = sbr.rel (0) target = $region9
    $region8: #{tpu_custom_call.1} parent=1 // pred_region
      %s30 = ssub.s32 8192, 8192
      %31 = vsyncadd [#allocation6], %s30
      %s32 = sshll.u32 [#allocation5], 4
      %s33 = int_to_ptr.vmem [resolvable:$true] %s32
      %38 = dma.hbm_to_vmem [thread:$0]  %s1, 8192, %s33, [#allocation6], 128, 128, 8
    $region9: #{tpu_custom_call.1} parent=1 // pred_fallthru
      _
    // Predicated region
    $region10: #{tpu_custom_call.1} parent=1 // pred_check
      _
    $region11: #{tpu_custom_call.1} parent=1 // pred_check_branch
      %40 = sbr.rel (0) target = $region13
    $region12: #{tpu_custom_call.1} parent=1 // pred_region
      _
    $region13: #{tpu_custom_call.1} parent=1 // pred_fallthru
      _
    // Predicated region
    $region14: #{tpu_custom_call.1} parent=1 // pred_check
      _
    $region15: #{tpu_custom_call.1} parent=1 // pred_check_branch
      %42 = sbr.rel (0) target = $region17
    $region16: #{tpu_custom_call.1} parent=1 // pred_region
      %s44 = ssub.s32 2048, 2048
      %45 = vsyncadd [#allocation6], %s44
      %s46 = sshll.u32 [#allocation7], 4
      %s47 = int_to_ptr.vmem [resolvable:$true] %s46
      %52 = dma.hbm_to_vmem [thread:$0]  %s3, 2048, %s47, [#allocation6], 64, 64, 4
    $region17: #{tpu_custom_call.1} parent=1 // pred_fallthru
      _
    // Predicated region
    $region18: #{tpu_custom_call.1} parent=1 // pred_check
      _
    $region19: #{tpu_custom_call.1} parent=1 // pred_check_branch
      %54 = sbr.rel (0) target = $region21
    $region20: #{tpu_custom_call.1} parent=1 // pred_region
      _
    $region21: #{tpu_custom_call.1} parent=1 // pred_fallthru
      _
    // Predicated region
    $region22: #{tpu_custom_call.1} parent=1 // pred_check
      _
    $region23: #{tpu_custom_call.1} parent=1 // pred_check_branch
      %56 = sbr.rel (0) target = $region25
    $region24: #{tpu_custom_call.1} parent=1 // pred_region
      %57 = dma.done [#allocation3], 256
    $region25: #{tpu_custom_call.1} parent=1 // pred_fallthru
      _
    // Predicated region
    $region26: #{tpu_custom_call.1} parent=1 // pred_check
      _
    $region27: #{tpu_custom_call.1} parent=1 // pred_check_branch
      %59 = sbr.rel (0) target = $region29
    $region28: #{tpu_custom_call.1} parent=1 // pred_region
      %60 = dma.done [#allocation6], 8192
    $region29: #{tpu_custom_call.1} parent=1 // pred_fallthru
      _
    // Predicated region
    $region30: #{tpu_custom_call.1} parent=1 // pred_check
      _
    $region31: #{tpu_custom_call.1} parent=1 // pred_check_branch
      %62 = sbr.rel (0) target = $region33
    $region32: #{tpu_custom_call.1} parent=1 // pred_region
      %63 = dma.done [#allocation6], 2048
    $region33: #{tpu_custom_call.1} parent=1 // pred_fallthru
      _
    %v65 = vld [vmem:[#allocation2] sm:$0xff]
    %v66 = vld [vmem:[#allocation2 + $0x8] sm:$0xff]
    %v67 = vld [vmem:[#allocation5] sm:$0xff]
    %v68 = vld [vmem:[#allocation5 + $0x8] sm:$0xff]
    %v69 = vld [vmem:[#allocation5 + $0x10] sm:$0xff]
    %v70 = vld [vmem:[#allocation5 + $0x18] sm:$0xff]
    %v71 = vld [vmem:[#allocation5 + $0x20] sm:$0xff]
    %v72 = vld [vmem:[#allocation5 + $0x28] sm:$0xff]
    %v73 = vld [vmem:[#allocation5 + $0x30] sm:$0xff]
    %v74 = vld [vmem:[#allocation5 + $0x38] sm:$0xff]
    %v75 = vld [vmem:[#allocation5 + $0x40] sm:$0xff]
    %v76 = vld [vmem:[#allocation5 + $0x48] sm:$0xff]
    %v77 = vld [vmem:[#allocation5 + $0x50] sm:$0xff]
    %v78 = vld [vmem:[#allocation5 + $0x58] sm:$0xff]
    %v79 = vld [vmem:[#allocation5 + $0x60] sm:$0xff]
    %v80 = vld [vmem:[#allocation5 + $0x68] sm:$0xff]
    %v81 = vld [vmem:[#allocation5 + $0x70] sm:$0xff]
    %v82 = vld [vmem:[#allocation5 + $0x78] sm:$0xff]
    %v83 = vld [vmem:[#allocation5 + $0x80] sm:$0xff]
    %v84 = vld [vmem:[#allocation5 + $0x88] sm:$0xff]
    %v85 = vld [vmem:[#allocation5 + $0x90] sm:$0xff]
    %v86 = vld [vmem:[#allocation5 + $0x98] sm:$0xff]
    %v87 = vld [vmem:[#allocation5 + $0xa0] sm:$0xff]
    %v88 = vld [vmem:[#allocation5 + $0xa8] sm:$0xff]
    %v89 = vld [vmem:[#allocation5 + $0xb0] sm:$0xff]
    %v90 = vld [vmem:[#allocation5 + $0xb8] sm:$0xff]
    %v91 = vld [vmem:[#allocation5 + $0xc0] sm:$0xff]
    %v92 = vld [vmem:[#allocation5 + $0xc8] sm:$0xff]
    %v93 = vld [vmem:[#allocation5 + $0xd0] sm:$0xff]
    %v94 = vld [vmem:[#allocation5 + $0xd8] sm:$0xff]
    %v95 = vld [vmem:[#allocation5 + $0xe0] sm:$0xff]
    %v96 = vld [vmem:[#allocation5 + $0xe8] sm:$0xff]
    %v97 = vld [vmem:[#allocation5 + $0xf0] sm:$0xff]
    %v98 = vld [vmem:[#allocation5 + $0xf8] sm:$0xff]
    %v99 = vld [vmem:[#allocation5 + $0x100] sm:$0xff]
    %v100 = vld [vmem:[#allocation5 + $0x108] sm:$0xff]
    %v101 = vld [vmem:[#allocation5 + $0x110] sm:$0xff]
    %v102 = vld [vmem:[#allocation5 + $0x118] sm:$0xff]
    %v103 = vld [vmem:[#allocation5 + $0x120] sm:$0xff]
    %v104 = vld [vmem:[#allocation5 + $0x128] sm:$0xff]
    %v105 = vld [vmem:[#allocation5 + $0x130] sm:$0xff]
    %v106 = vld [vmem:[#allocation5 + $0x138] sm:$0xff]
    %v107 = vld [vmem:[#allocation5 + $0x140] sm:$0xff]
    %v108 = vld [vmem:[#allocation5 + $0x148] sm:$0xff]
    %v109 = vld [vmem:[#allocation5 + $0x150] sm:$0xff]
    %v110 = vld [vmem:[#allocation5 + $0x158] sm:$0xff]
    %v111 = vld [vmem:[#allocation5 + $0x160] sm:$0xff]
    %v112 = vld [vmem:[#allocation5 + $0x168] sm:$0xff]
    %v113 = vld [vmem:[#allocation5 + $0x170] sm:$0xff]
    %v114 = vld [vmem:[#allocation5 + $0x178] sm:$0xff]
    %v115 = vld [vmem:[#allocation5 + $0x180] sm:$0xff]
    %v116 = vld [vmem:[#allocation5 + $0x188] sm:$0xff]
    %v117 = vld [vmem:[#allocation5 + $0x190] sm:$0xff]
    %v118 = vld [vmem:[#allocation5 + $0x198] sm:$0xff]
    %v119 = vld [vmem:[#allocation5 + $0x1a0] sm:$0xff]
    %v120 = vld [vmem:[#allocation5 + $0x1a8] sm:$0xff]
    %v121 = vld [vmem:[#allocation5 + $0x1b0] sm:$0xff]
    %v122 = vld [vmem:[#allocation5 + $0x1b8] sm:$0xff]
    %v123 = vld [vmem:[#allocation5 + $0x1c0] sm:$0xff]
    %v124 = vld [vmem:[#allocation5 + $0x1c8] sm:$0xff]
    %v125 = vld [vmem:[#allocation5 + $0x1d0] sm:$0xff]
    %v126 = vld [vmem:[#allocation5 + $0x1d8] sm:$0xff]
    %v127 = vld [vmem:[#allocation5 + $0x1e0] sm:$0xff]
    %v128 = vld [vmem:[#allocation5 + $0x1e8] sm:$0xff]
    %v129 = vld [vmem:[#allocation5 + $0x1f0] sm:$0xff]
    %v130 = vld [vmem:[#allocation5 + $0x1f8] sm:$0xff]
    %v131 = vld [vmem:[%s2] sm:$0x3]
    %v133 = vlaneseq
    %v134 = vshrl.u32 %v133, 7
    %v135 = vsub.s32 0, %v134
    %v136 = vrot.slane %v131, %v135
    %v137 = vlaneseq
    %v138 = vshrl.u32 %v137, 7
    %v139 = vsub.s32 1, %v138
    %v140 = vrot.slane %v131, %v139
    %v145 = vunpack.c.l.b16 %v65
    %v146 = vunpack.c.h.b16 %v65
    %v147 = vunpack.c.l.b16 %v66
    %v148 = vunpack.c.h.b16 %v66
    %v149 = vpack.c.b16 %v145, %v145
    %v150 = vpack.c.b16 %v146, %v146
    %v151 = vpack.c.b16 %v147, %v147
    %v152 = vpack.c.b16 %v148, %v148
    %v221 = vunpack.c.l.b16 %v67
    %v222 = vunpack.c.h.b16 %v67
    %v223 = vunpack.c.l.b16 %v68
    %v224 = vunpack.c.h.b16 %v68
    %v225 = vunpack.c.l.b16 %v69
    %v226 = vunpack.c.h.b16 %v69
    %v227 = vunpack.c.l.b16 %v70
    %v228 = vunpack.c.h.b16 %v70
    %v229 = vunpack.c.l.b16 %v71
    %v230 = vunpack.c.h.b16 %v71
    %v231 = vunpack.c.l.b16 %v72
    %v232 = vunpack.c.h.b16 %v72
    %v233 = vunpack.c.l.b16 %v73
    %v234 = vunpack.c.h.b16 %v73
    %v235 = vunpack.c.l.b16 %v74
    %v236 = vunpack.c.h.b16 %v74
    %v237 = vunpack.c.l.b16 %v75
    %v238 = vunpack.c.h.b16 %v75
    %v239 = vunpack.c.l.b16 %v76
    %v240 = vunpack.c.h.b16 %v76
    %v241 = vunpack.c.l.b16 %v77
    %v242 = vunpack.c.h.b16 %v77
    %v243 = vunpack.c.l.b16 %v78
    %v244 = vunpack.c.h.b16 %v78
    %v245 = vunpack.c.l.b16 %v79
    %v246 = vunpack.c.h.b16 %v79
    %v247 = vunpack.c.l.b16 %v80
    %v248 = vunpack.c.h.b16 %v80
    %v249 = vunpack.c.l.b16 %v81
    %v250 = vunpack.c.h.b16 %v81
    %v251 = vunpack.c.l.b16 %v82
    %v252 = vunpack.c.h.b16 %v82
    %v253 = vunpack.c.l.b16 %v83
    %v254 = vunpack.c.h.b16 %v83
    %v255 = vunpack.c.l.b16 %v84
    %v256 = vunpack.c.h.b16 %v84
    %v257 = vunpack.c.l.b16 %v85
    %v258 = vunpack.c.h.b16 %v85
    %v259 = vunpack.c.l.b16 %v86
    %v260 = vunpack.c.h.b16 %v86
    %v261 = vunpack.c.l.b16 %v87
    %v262 = vunpack.c.h.b16 %v87
    %v263 = vunpack.c.l.b16 %v88
    %v264 = vunpack.c.h.b16 %v88
    %v265 = vunpack.c.l.b16 %v89
    %v266 = vunpack.c.h.b16 %v89
    %v267 = vunpack.c.l.b16 %v90
    %v268 = vunpack.c.h.b16 %v90
    %v269 = vunpack.c.l.b16 %v91
    %v270 = vunpack.c.h.b16 %v91
    %v271 = vunpack.c.l.b16 %v92
    %v272 = vunpack.c.h.b16 %v92
    %v273 = vunpack.c.l.b16 %v93
    %v274 = vunpack.c.h.b16 %v93
    %v275 = vunpack.c.l.b16 %v94
    %v276 = vunpack.c.h.b16 %v94
    %v277 = vunpack.c.l.b16 %v95
    %v278 = vunpack.c.h.b16 %v95
    %v279 = vunpack.c.l.b16 %v96
    %v280 = vunpack.c.h.b16 %v96
    %v281 = vunpack.c.l.b16 %v97
    %v282 = vunpack.c.h.b16 %v97
    %v283 = vunpack.c.l.b16 %v98
    %v284 = vunpack.c.h.b16 %v98
    %v285 = vunpack.c.l.b16 %v99
    %v286 = vunpack.c.h.b16 %v99
    %v287 = vunpack.c.l.b16 %v100
    %v288 = vunpack.c.h.b16 %v100
    %v289 = vunpack.c.l.b16 %v101
    %v290 = vunpack.c.h.b16 %v101
    %v291 = vunpack.c.l.b16 %v102
    %v292 = vunpack.c.h.b16 %v102
    %v293 = vunpack.c.l.b16 %v103
    %v294 = vunpack.c.h.b16 %v103
    %v295 = vunpack.c.l.b16 %v104
    %v296 = vunpack.c.h.b16 %v104
    %v297 = vunpack.c.l.b16 %v105
    %v298 = vunpack.c.h.b16 %v105
    %v299 = vunpack.c.l.b16 %v106
    %v300 = vunpack.c.h.b16 %v106
    %v301 = vunpack.c.l.b16 %v107
    %v302 = vunpack.c.h.b16 %v107
    %v303 = vunpack.c.l.b16 %v108
    %v304 = vunpack.c.h.b16 %v108
    %v305 = vunpack.c.l.b16 %v109
    %v306 = vunpack.c.h.b16 %v109
    %v307 = vunpack.c.l.b16 %v110
    %v308 = vunpack.c.h.b16 %v110
    %v309 = vunpack.c.l.b16 %v111
    %v310 = vunpack.c.h.b16 %v111
    %v311 = vunpack.c.l.b16 %v112
    %v312 = vunpack.c.h.b16 %v112
    %v313 = vunpack.c.l.b16 %v113
    %v314 = vunpack.c.h.b16 %v113
    %v315 = vunpack.c.l.b16 %v114
    %v316 = vunpack.c.h.b16 %v114
    %v317 = vunpack.c.l.b16 %v115
    %v318 = vunpack.c.h.b16 %v115
    %v319 = vunpack.c.l.b16 %v116
    %v320 = vunpack.c.h.b16 %v116
    %v321 = vunpack.c.l.b16 %v117
    %v322 = vunpack.c.h.b16 %v117
    %v323 = vunpack.c.l.b16 %v118
    %v324 = vunpack.c.h.b16 %v118
    %v325 = vunpack.c.l.b16 %v119
    %v326 = vunpack.c.h.b16 %v119
    %v327 = vunpack.c.l.b16 %v120
    %v328 = vunpack.c.h.b16 %v120
    %v329 = vunpack.c.l.b16 %v121
    %v330 = vunpack.c.h.b16 %v121
    %v331 = vunpack.c.l.b16 %v122
    %v332 = vunpack.c.h.b16 %v122
    %v333 = vunpack.c.l.b16 %v123
    %v334 = vunpack.c.h.b16 %v123
    %v335 = vunpack.c.l.b16 %v124
    %v336 = vunpack.c.h.b16 %v124
    %v337 = vunpack.c.l.b16 %v125
    %v338 = vunpack.c.h.b16 %v125
    %v339 = vunpack.c.l.b16 %v126
    %v340 = vunpack.c.h.b16 %v126
    %v341 = vunpack.c.l.b16 %v127
    %v342 = vunpack.c.h.b16 %v127
    %v343 = vunpack.c.l.b16 %v128
    %v344 = vunpack.c.h.b16 %v128
    %v345 = vunpack.c.l.b16 %v129
    %v346 = vunpack.c.h.b16 %v129
    %v347 = vunpack.c.l.b16 %v130
    %v348 = vunpack.c.h.b16 %v130
    %v349 = vpack.c.b16 %v223, %v221
    %v350 = vpack.c.b16 %v224, %v222
    %v351 = vpack.c.b16 %v227, %v225
    %v352 = vpack.c.b16 %v228, %v226
    %v353 = vpack.c.b16 %v231, %v229
    %v354 = vpack.c.b16 %v232, %v230
    %v355 = vpack.c.b16 %v235, %v233
    %v356 = vpack.c.b16 %v236, %v234
    %v357 = vpack.c.b16 %v239, %v237
    %v358 = vpack.c.b16 %v240, %v238
    %v359 = vpack.c.b16 %v243, %v241
    %v360 = vpack.c.b16 %v244, %v242
    %v361 = vpack.c.b16 %v247, %v245
    %v362 = vpack.c.b16 %v248, %v246
    %v363 = vpack.c.b16 %v251, %v249
    %v364 = vpack.c.b16 %v252, %v250
    %v365 = vpack.c.b16 %v255, %v253
    %v366 = vpack.c.b16 %v256, %v254
    %v367 = vpack.c.b16 %v259, %v257
    %v368 = vpack.c.b16 %v260, %v258
    %v369 = vpack.c.b16 %v263, %v261
    %v370 = vpack.c.b16 %v264, %v262
    %v371 = vpack.c.b16 %v267, %v265
    %v372 = vpack.c.b16 %v268, %v266
    %v373 = vpack.c.b16 %v271, %v269
    %v374 = vpack.c.b16 %v272, %v270
    %v375 = vpack.c.b16 %v275, %v273
    %v376 = vpack.c.b16 %v276, %v274
    %v377 = vpack.c.b16 %v279, %v277
    %v378 = vpack.c.b16 %v280, %v278
    %v379 = vpack.c.b16 %v283, %v281
    %v380 = vpack.c.b16 %v284, %v282
    %v381 = vpack.c.b16 %v287, %v285
    %v382 = vpack.c.b16 %v288, %v286
    %v383 = vpack.c.b16 %v291, %v289
    %v384 = vpack.c.b16 %v292, %v290
    %v385 = vpack.c.b16 %v295, %v293
    %v386 = vpack.c.b16 %v296, %v294
    %v387 = vpack.c.b16 %v299, %v297
    %v388 = vpack.c.b16 %v300, %v298
    %v389 = vpack.c.b16 %v303, %v301
    %v390 = vpack.c.b16 %v304, %v302
    %v391 = vpack.c.b16 %v307, %v305
    %v392 = vpack.c.b16 %v308, %v306
    %v393 = vpack.c.b16 %v311, %v309
    %v394 = vpack.c.b16 %v312, %v310
    %v395 = vpack.c.b16 %v315, %v313
    %v396 = vpack.c.b16 %v316, %v314
    %v397 = vpack.c.b16 %v319, %v317
    %v398 = vpack.c.b16 %v320, %v318
    %v399 = vpack.c.b16 %v323, %v321
    %v400 = vpack.c.b16 %v324, %v322
    %v401 = vpack.c.b16 %v327, %v325
    %v402 = vpack.c.b16 %v328, %v326
    %v403 = vpack.c.b16 %v331, %v329
    %v404 = vpack.c.b16 %v332, %v330
    %v405 = vpack.c.b16 %v335, %v333
    %v406 = vpack.c.b16 %v336, %v334
    %v407 = vpack.c.b16 %v339, %v337
    %v408 = vpack.c.b16 %v340, %v338
    %v409 = vpack.c.b16 %v343, %v341
    %v410 = vpack.c.b16 %v344, %v342
    %v411 = vpack.c.b16 %v347, %v345
    %v412 = vpack.c.b16 %v348, %v346
    %477 = vmatprep.subr.bf16.mxu0 %v350
    %478 = vmatpush1.bf16.msra.mxu0 %v349
    %479 = vmatprep.subr.bf16.mxu0 %v352
    %480 = vmatpush1.bf16.msra.mxu0 %v351
    %481 = vmatprep.subr.bf16.mxu0 %v354
    %482 = vmatpush1.bf16.msra.mxu0 %v353
    %483 = vmatprep.subr.bf16.mxu0 %v356
    %484 = vmatpush1.bf16.msra.mxu0 %v355
    %485 = vmatprep.subr.bf16.mxu0 %v358
    %486 = vmatpush1.bf16.msra.mxu0 %v357
    %487 = vmatprep.subr.bf16.mxu0 %v360
    %488 = vmatpush1.bf16.msra.mxu0 %v359
    %489 = vmatprep.subr.bf16.mxu0 %v362
    %490 = vmatpush1.bf16.msra.mxu0 %v361
    %491 = vmatprep.subr.bf16.mxu0 %v364
    %492 = vmatpush1.bf16.msra.mxu0 %v363
    %493 = vmatprep.subr.bf16.mxu0 %v366
    %494 = vmatpush1.bf16.msra.mxu0 %v365
    %495 = vmatprep.subr.bf16.mxu0 %v368
    %496 = vmatpush1.bf16.msra.mxu0 %v367
    %497 = vmatprep.subr.bf16.mxu0 %v370
    %498 = vmatpush1.bf16.msra.mxu0 %v369
    %499 = vmatprep.subr.bf16.mxu0 %v372
    %500 = vmatpush1.bf16.msra.mxu0 %v371
    %501 = vmatprep.subr.bf16.mxu0 %v374
    %502 = vmatpush1.bf16.msra.mxu0 %v373
    %503 = vmatprep.subr.bf16.mxu0 %v376
    %504 = vmatpush1.bf16.msra.mxu0 %v375
    %505 = vmatprep.subr.bf16.mxu0 %v378
    %506 = vmatpush1.bf16.msra.mxu0 %v377
    %507 = vmatprep.subr.bf16.mxu0 %v380
    %508 = vmatpush1.bf16.msra.mxu0 %v379
    %509 = vmatprep.mubr.bf16.mxu0 %v150
    %510 = vmatmul.mubr.bf16.gmra.mrb[0].mxu0 %v149
    %v511 = vpop.f32.mrb[0].mxu0
    %v512 = vadd.f32 %v136, %v511
    %v513 = vpop.f32.mrb[0].mxu0
    %v514 = vadd.f32 %v140, %v513
    %v515 = vpop.f32.mrb[0].mxu0
    %v516 = vpop.f32.mrb[0].mxu0
    %517 = vdwg.mxu0
    %518 = vmatprep.subr.bf16.mxu0 %v382
    %519 = vmatpush1.bf16.msra.mxu0 %v381
    %520 = vmatprep.subr.bf16.mxu0 %v384
    %521 = vmatpush1.bf16.msra.mxu0 %v383
    %522 = vmatprep.subr.bf16.mxu0 %v386
    %523 = vmatpush1.bf16.msra.mxu0 %v385
    %524 = vmatprep.subr.bf16.mxu0 %v388
    %525 = vmatpush1.bf16.msra.mxu0 %v387
    %526 = vmatprep.subr.bf16.mxu0 %v390
    %527 = vmatpush1.bf16.msra.mxu0 %v389
    %528 = vmatprep.subr.bf16.mxu0 %v392
    %529 = vmatpush1.bf16.msra.mxu0 %v391
    %530 = vmatprep.subr.bf16.mxu0 %v394
    %531 = vmatpush1.bf16.msra.mxu0 %v393
    %532 = vmatprep.subr.bf16.mxu0 %v396
    %533 = vmatpush1.bf16.msra.mxu0 %v395
    %534 = vmatprep.subr.bf16.mxu0 %v398
    %535 = vmatpush1.bf16.msra.mxu0 %v397
    %536 = vmatprep.subr.bf16.mxu0 %v400
    %537 = vmatpush1.bf16.msra.mxu0 %v399
    %538 = vmatprep.subr.bf16.mxu0 %v402
    %539 = vmatpush1.bf16.msra.mxu0 %v401
    %540 = vmatprep.subr.bf16.mxu0 %v404
    %541 = vmatpush1.bf16.msra.mxu0 %v403
    %542 = vmatprep.subr.bf16.mxu0 %v406
    %543 = vmatpush1.bf16.msra.mxu0 %v405
    %544 = vmatprep.subr.bf16.mxu0 %v408
    %545 = vmatpush1.bf16.msra.mxu0 %v407
    %546 = vmatprep.subr.bf16.mxu0 %v410
    %547 = vmatpush1.bf16.msra.mxu0 %v409
    %548 = vmatprep.subr.bf16.mxu0 %v412
    %549 = vmatpush1.bf16.msra.mxu0 %v411
    %550 = vmatprep.mubr.bf16.mxu0 %v152
    %551 = vmatmul.mubr.bf16.gmra.mrb[0].mxu0 %v151
    %v552 = vpop.f32.mrb[0].mxu0
    %v553 = vadd.f32 %v512, %v552
    %v554 = vpop.f32.mrb[0].mxu0
    %v555 = vadd.f32 %v514, %v554
    %v556 = vpop.f32.mrb[0].mxu0
    %v557 = vpop.f32.mrb[0].mxu0
    %558 = vdwg.mxu0
    %559 = vst [vmem:[#allocation8] sm:$0xff] %v553
    %560 = vst [vmem:[#allocation8 + $0x8] sm:$0xff] %v555
    %v561 = vpack.c.bf16 %v553, %v553
    %v562 = vpack.c.bf16 %v555, %v555
    %v563 = vld [vmem:[#allocation7] sm:$0xf]
    %v564 = vld [vmem:[#allocation7 + $0x4] sm:$0xf]
    %v565 = vld [vmem:[#allocation7 + $0x8] sm:$0xf]
    %v566 = vld [vmem:[#allocation7 + $0xc] sm:$0xf]
    %v567 = vld [vmem:[#allocation7 + $0x10] sm:$0xf]
    %v568 = vld [vmem:[#allocation7 + $0x14] sm:$0xf]
    %v569 = vld [vmem:[#allocation7 + $0x18] sm:$0xf]
    %v570 = vld [vmem:[#allocation7 + $0x1c] sm:$0xf]
    %v571 = vld [vmem:[#allocation7 + $0x20] sm:$0xf]
    %v572 = vld [vmem:[#allocation7 + $0x24] sm:$0xf]
    %v573 = vld [vmem:[#allocation7 + $0x28] sm:$0xf]
    %v574 = vld [vmem:[#allocation7 + $0x2c] sm:$0xf]
    %v575 = vld [vmem:[#allocation7 + $0x30] sm:$0xf]
    %v576 = vld [vmem:[#allocation7 + $0x34] sm:$0xf]
    %v577 = vld [vmem:[#allocation7 + $0x38] sm:$0xf]
    %v578 = vld [vmem:[#allocation7 + $0x3c] sm:$0xf]
    %v579 = vld [vmem:[#allocation7 + $0x40] sm:$0xf]
    %v580 = vld [vmem:[#allocation7 + $0x44] sm:$0xf]
    %v581 = vld [vmem:[#allocation7 + $0x48] sm:$0xf]
    %v582 = vld [vmem:[#allocation7 + $0x4c] sm:$0xf]
    %v583 = vld [vmem:[#allocation7 + $0x50] sm:$0xf]
    %v584 = vld [vmem:[#allocation7 + $0x54] sm:$0xf]
    %v585 = vld [vmem:[#allocation7 + $0x58] sm:$0xf]
    %v586 = vld [vmem:[#allocation7 + $0x5c] sm:$0xf]
    %v587 = vld [vmem:[#allocation7 + $0x60] sm:$0xf]
    %v588 = vld [vmem:[#allocation7 + $0x64] sm:$0xf]
    %v589 = vld [vmem:[#allocation7 + $0x68] sm:$0xf]
    %v590 = vld [vmem:[#allocation7 + $0x6c] sm:$0xf]
    %v591 = vld [vmem:[#allocation7 + $0x70] sm:$0xf]
    %v592 = vld [vmem:[#allocation7 + $0x74] sm:$0xf]
    %v593 = vld [vmem:[#allocation7 + $0x78] sm:$0xf]
    %v594 = vld [vmem:[#allocation7 + $0x7c] sm:$0xf]
    %v595 = vld [vmem:[%s4] sm:$0x1]
    %v597 = vlaneseq
    %v598 = vshrl.u32 %v597, 7
    %v599 = vsub.s32 0, %v598
    %v600 = vrot.slane %v595, %v599
    %v634 = vunpack.c.l.b16 %v563
    %v635 = vunpack.c.l.b16 %v564
    %v636 = vunpack.c.l.b16 %v565
    %v637 = vunpack.c.l.b16 %v566
    %v638 = vunpack.c.l.b16 %v567
    %v639 = vunpack.c.l.b16 %v568
    %v640 = vunpack.c.l.b16 %v569
    %v641 = vunpack.c.l.b16 %v570
    %v642 = vunpack.c.l.b16 %v571
    %v643 = vunpack.c.l.b16 %v572
    %v644 = vunpack.c.l.b16 %v573
    %v645 = vunpack.c.l.b16 %v574
    %v646 = vunpack.c.l.b16 %v575
    %v647 = vunpack.c.l.b16 %v576
    %v648 = vunpack.c.l.b16 %v577
    %v649 = vunpack.c.l.b16 %v578
    %v650 = vunpack.c.l.b16 %v579
    %v651 = vunpack.c.l.b16 %v580
    %v652 = vunpack.c.l.b16 %v581
    %v653 = vunpack.c.l.b16 %v582
    %v654 = vunpack.c.l.b16 %v583
    %v655 = vunpack.c.l.b16 %v584
    %v656 = vunpack.c.l.b16 %v585
    %v657 = vunpack.c.l.b16 %v586
    %v658 = vunpack.c.l.b16 %v587
    %v659 = vunpack.c.l.b16 %v588
    %v660 = vunpack.c.l.b16 %v589
    %v661 = vunpack.c.l.b16 %v590
    %v662 = vunpack.c.l.b16 %v591
    %v663 = vunpack.c.l.b16 %v592
    %v664 = vunpack.c.l.b16 %v593
    %v665 = vunpack.c.l.b16 %v594
    %v666 = vpack.c.b16 %v635, %v634
    %v667 = vpack.c.b16 %v637, %v636
    %v668 = vpack.c.b16 %v639, %v638
    %v669 = vpack.c.b16 %v641, %v640
    %v670 = vpack.c.b16 %v643, %v642
    %v671 = vpack.c.b16 %v645, %v644
    %v672 = vpack.c.b16 %v647, %v646
    %v673 = vpack.c.b16 %v649, %v648
    %v674 = vpack.c.b16 %v651, %v650
    %v675 = vpack.c.b16 %v653, %v652
    %v676 = vpack.c.b16 %v655, %v654
    %v677 = vpack.c.b16 %v657, %v656
    %v678 = vpack.c.b16 %v659, %v658
    %v679 = vpack.c.b16 %v661, %v660
    %v680 = vpack.c.b16 %v663, %v662
    %v681 = vpack.c.b16 %v665, %v664
    %698 = vmatprep.subr.bf16.mxu0 0
    %699 = vmatpush1.bf16.msra.mxu0 %v666
    %700 = vmatprep.subr.bf16.mxu0 0
    %701 = vmatpush1.bf16.msra.mxu0 %v667
    %702 = vmatprep.subr.bf16.mxu0 0
    %703 = vmatpush1.bf16.msra.mxu0 %v668
    %704 = vmatprep.subr.bf16.mxu0 0
    %705 = vmatpush1.bf16.msra.mxu0 %v669
    %706 = vmatprep.subr.bf16.mxu0 0
    %707 = vmatpush1.bf16.msra.mxu0 %v670
    %708 = vmatprep.subr.bf16.mxu0 0
    %709 = vmatpush1.bf16.msra.mxu0 %v671
    %710 = vmatprep.subr.bf16.mxu0 0
    %711 = vmatpush1.bf16.msra.mxu0 %v672
    %712 = vmatprep.subr.bf16.mxu0 0
    %713 = vmatpush1.bf16.msra.mxu0 %v673
    %714 = vmatprep.subr.bf16.mxu0 0
    %715 = vmatpush1.bf16.msra.mxu0 %v674
    %716 = vmatprep.subr.bf16.mxu0 0
    %717 = vmatpush1.bf16.msra.mxu0 %v675
    %718 = vmatprep.subr.bf16.mxu0 0
    %719 = vmatpush1.bf16.msra.mxu0 %v676
    %720 = vmatprep.subr.bf16.mxu0 0
    %721 = vmatpush1.bf16.msra.mxu0 %v677
    %722 = vmatprep.subr.bf16.mxu0 0
    %723 = vmatpush1.bf16.msra.mxu0 %v678
    %724 = vmatprep.subr.bf16.mxu0 0
    %725 = vmatpush1.bf16.msra.mxu0 %v679
    %726 = vmatprep.subr.bf16.mxu0 0
    %727 = vmatpush1.bf16.msra.mxu0 %v680
    %728 = vmatprep.subr.bf16.mxu0 0
    %729 = vmatpush1.bf16.msra.mxu0 %v681
    %730 = vmatprep.mubr.bf16.mxu0 %v562
    %731 = vmatmul.mubr.bf16.gmra.mrb[0].mxu0 %v561
    %v732 = vpop.f32.mrb[0].mxu0
    %v733 = vadd.f32 %v600, %v732
    %v734 = vpop.f32.mrb[0].mxu0
    %v735 = vpop.f32.mrb[0].mxu0
    %v736 = vpop.f32.mrb[0].mxu0
    %737 = vdwg.mxu0
    %738 = vst [vmem:[#allocation9] sm:$0xff] %v733
    %v739 = vlaneseq
    %v740 = vand.u32 %v739, 127
    %vm741 = vcmp.lt.s32.totalorder %v740, 12
    %v742 = vsel %vm741, %v733, -1e+30
    %743 = vmax.xlane.f32.xlu0 %v742
    %v744 = vpop.xlane.xlu0 %743
    %v745 = vsub.f32 %v742, %v744
    %v746 = vmul.f32 %v745, 1.442695
    %v747 = vpow.pop %v746
    %748 = vadd.xlane.f32.xlu0 %v747
    %v749 = vpop.xlane.xlu0 %748
    %v750 = vrcp.pop %v749
    %v751 = vmul.f32 %v747, %v750
    %752 = vst [vmem:[#allocation11] sm:$0xff] %v751
    // Predicated region
    $region34: #{tpu_custom_call.1} parent=1 // pred_check
      _
    $region35: #{tpu_custom_call.1} parent=1 // pred_check_branch
      %754 = sbr.rel (0) target = $region37
    $region36: #{tpu_custom_call.1} parent=1 // pred_region
      %s756 = ssub.s32 256, 256
      %757 = vsyncadd [#allocation4], %s756
      %s759 = sshll.u32 [#allocation8], 4
      %s760 = int_to_ptr.vmem [resolvable:$true] %s759
      %762 = dma.vmem_to_hbm [thread:$0]  %s760, 256, %s5, [#allocation4]
    $region37: #{tpu_custom_call.1} parent=1 // pred_fallthru
      _
    // Predicated region
    $region38: #{tpu_custom_call.1} parent=1 // pred_check
      _
    $region39: #{tpu_custom_call.1} parent=1 // pred_check_branch
      %764 = sbr.rel (0) target = $region41
    $region40: #{tpu_custom_call.1} parent=1 // pred_region
      %s766 = ssub.s32 128, 128
      %767 = vsyncadd [#allocation10], %s766
      %s769 = sshll.u32 [#allocation9], 4
      %s770 = int_to_ptr.vmem [resolvable:$true] %s769
      %772 = dma.vmem_to_hbm [thread:$0]  %s770, 128, %s6, [#allocation10]
    $region41: #{tpu_custom_call.1} parent=1 // pred_fallthru
      _
    // Predicated region
    $region42: #{tpu_custom_call.1} parent=1 // pred_check
      _
    $region43: #{tpu_custom_call.1} parent=1 // pred_check_branch
      %774 = sbr.rel (0) target = $region45
    $region44: #{tpu_custom_call.1} parent=1 // pred_region
      %s776 = ssub.s32 128, 128
      %777 = vsyncadd [#allocation10], %s776
      %s779 = sshll.u32 [#allocation11], 4
      %s780 = int_to_ptr.vmem [resolvable:$true] %s779
      %782 = dma.vmem_to_hbm [thread:$0]  %s780, 128, %s7, [#allocation10]
    $region45: #{tpu_custom_call.1} parent=1 // pred_fallthru
      _
    // Predicated region
    $region46: #{tpu_custom_call.1} parent=1 // pred_check
      _
    $region47: #{tpu_custom_call.1} parent=1 // pred_check_branch
      %784 = sbr.rel (0) target = $region49
    $region48: #{tpu_custom_call.1} parent=1 // pred_region
      %785 = dma.done [#allocation4], 256
    $region49: #{tpu_custom_call.1} parent=1 // pred_fallthru
      _
    // Predicated region
    $region50: #{tpu_custom_call.1} parent=1 // pred_check
      _
    $region51: #{tpu_custom_call.1} parent=1 // pred_check_branch
      %787 = sbr.rel (0) target = $region53
    $region52: #{tpu_custom_call.1} parent=1 // pred_region
      %788 = dma.done [#allocation10], 128
    $region53: #{tpu_custom_call.1} parent=1 // pred_fallthru
      _
    // Predicated region
    $region54: #{tpu_custom_call.1} parent=1 // pred_check
      _
    $region55: #{tpu_custom_call.1} parent=1 // pred_check_branch
      %790 = sbr.rel (0) target = $region57
    $region56: #{tpu_custom_call.1} parent=1 // pred_region
      %791 = dma.done [#allocation10], 128
    $region57: #{tpu_custom_call.1} parent=1 // pred_fallthru
      _
    %792 = vsyncpa [#allocation3], 1
    %793 = vsyncpa [#allocation6], 1
    %794 = vsyncpa [#allocation4], 1
    %795 = vsyncpa [#allocation10], 1

</llo_original>
